<compile_context>
chip_gen: v7x
topology: tpu7x:2x2x1
jax: 0.10.0
libtpu: 0.0.40
codegen_flags: <defaults>
</compile_context>

<pallas_src>
import functools
import math

import jax
import jax.numpy as jnp
from jax import lax
from jax.experimental import pallas as pl
from jax.experimental.pallas import tpu as pltpu


# Finite large-negative mask value keeps max/exp math NaN-free.
_MASK_VALUE = -1e30
# >= the scoped-VMEM default on v5e (16 MiB) and == the v6e/v7x default.
_VMEM_LIMIT = 32 * 1024 * 1024


def _round_up(x, m):
    return ((x + m - 1) // m) * m


def _pick_divisor(dim, candidates):
    """Largest candidate that evenly divides dim, else the full dimension."""
    for c in candidates:
        if dim % c == 0:
            return c
    return dim


# --------------------------------------------------------------------------
# Fused QKV projection: x (M, d_in) @ w_qkv (d_in, 3*d_out) written directly
# in head-major layout (3*H, M, head_dim).  No bias (qkv_bias=False).
# --------------------------------------------------------------------------
def _qkv_proj_kernel(x_ref, w_ref, o_ref, acc_ref, *, n_groups, head_dim):
    kk = pl.program_id(1)

    @pl.when(kk == 0)
    def _init():
        acc_ref[...] = jnp.zeros_like(acc_ref)

    # One wide MXU dot per step (full N utilization).
    acc_ref[...] += jnp.dot(x_ref[...], w_ref[...],
                            preferred_element_type=jnp.float32)

    @pl.when(kk == pl.num_programs(1) - 1)
    def _finalize():
        acc = acc_ref[...]
        # Split the wide accumulator into per-head slabs once, at finalize,
        # writing the head-major layout the flash kernel consumes directly.
        for g in range(n_groups):
            o_ref[g, :, :] = acc[:, g * head_dim:(g + 1) * head_dim].astype(
                o_ref.dtype)


def _qkv_projection(x, w_qkv, *, num_heads, head_dim, tm=512, tk=256):
    M, K = x.shape
    Kw, N = w_qkv.shape
    assert K == Kw
    n_groups = 3 * num_heads
    assert N == n_groups * head_dim

    tm = _pick_divisor(M, (tm, 256, 128, 64, 32, 16, 8))
    # Last-dim blocks must be a 128-multiple or the full dimension.
    tk = _pick_divisor(K, (tk, 128))

    kernel = functools.partial(_qkv_proj_kernel,
                               n_groups=n_groups, head_dim=head_dim)
    return pl.pallas_call(
        kernel,
        out_shape=jax.ShapeDtypeStruct((n_groups, M, head_dim), x.dtype),
        grid_spec=pltpu.PrefetchScalarGridSpec(
            num_scalar_prefetch=0,
            grid=(M // tm, K // tk),
            in_specs=[
                pl.BlockSpec((tm, tk), lambda i, k: (i, k)),
                pl.BlockSpec((tk, N), lambda i, k: (k, 0)),
            ],
            out_specs=pl.BlockSpec((n_groups, tm, head_dim),
                                   lambda i, k: (0, i, 0)),
            scratch_shapes=[pltpu.VMEM((tm, N), jnp.float32)],
        ),
        compiler_params=pltpu.CompilerParams(
            dimension_semantics=("parallel", "arbitrary"),
            vmem_limit_bytes=_VMEM_LIMIT,
        ),
    )(x, w_qkv)


# --------------------------------------------------------------------------
# Flash-attention kernel (causal, online softmax).
# Q is pre-scaled by 1/sqrt(head_dim) via the fused weights.
# --------------------------------------------------------------------------
def _flash_attn_kernel(q_ref, k_ref, v_ref, o_ref, m_ref, l_ref, acc_ref):
    qi = pl.program_id(2)
    ki = pl.program_id(3)           # logical k-tile index (NOT the clamped one)
    nk = pl.num_programs(3)

    @pl.when(ki == 0)
    def _init():
        m_ref[...] = jnp.full_like(m_ref, -jnp.inf)
        l_ref[...] = jnp.zeros_like(l_ref)
        acc_ref[...] = jnp.zeros_like(acc_ref)

    def _scores():
        # (blk, hd) x (blk, hd) contracted over head_dim -> (blk_q, blk_k).
        return lax.dot_general(q_ref[0], k_ref[0], (((1,), (1,)), ((), ())),
                               preferred_element_type=jnp.float32)

    def _update(s):
        v = v_ref[0]
        m_prev = m_ref[...]
        m_new = jnp.maximum(m_prev, jnp.max(s, axis=-1, keepdims=True))
        alpha = jnp.exp(m_prev - m_new)
        p = jnp.exp(s - m_new)
        l_ref[...] = alpha * l_ref[...] + jnp.sum(p, axis=-1, keepdims=True)
        acc_ref[...] = alpha * acc_ref[...] + jnp.dot(
            p.astype(v.dtype), v, preferred_element_type=jnp.float32)
        m_ref[...] = m_new

    # Fully-visible tile (strictly below the diagonal): no mask work at all.
    @pl.when(ki < qi)
    def _off_diag():
        _update(_scores())

    # Diagonal tile: triangular mask (also hides zero-padded key columns).
    @pl.when(ki == qi)
    def _diag():
        s = _scores()
        row = lax.broadcasted_iota(jnp.int32, s.shape, 0)
        col = lax.broadcasted_iota(jnp.int32, s.shape, 1)
        _update(jnp.where(col > row, _MASK_VALUE, s))

    # Tiles strictly above the diagonal (ki > qi) do nothing; their K/V DMAs
    # are also avoided by the clamped index_maps in _flash_attention.

    @pl.when(ki == nk - 1)
    def _finalize():
        o_ref[0] = (acc_ref[...] / l_ref[...]).astype(o_ref.dtype)


def _flash_attention(qkv, *, batch, num_heads, t_pad, blk, out_dtype):
    """qkv: (3*H, B*t_pad, hd) head-major; returns ctx (H, B*t_pad, hd)."""
    n_groups, M, hd = qkv.shape
    H = num_heads
    assert n_groups == 3 * H
    nq = t_pad // blk

    def q_map(b, h, qi, ki):
        return (h, b * nq + qi, 0)

    # Clamp to the diagonal: skipped causal tiles re-index the already-fetched
    # diagonal block, so the pipeline issues no extra HBM DMA for them.
    def k_map(b, h, qi, ki):
        return (H + h, b * nq + jnp.minimum(ki, qi), 0)

    def v_map(b, h, qi, ki):
        return (2 * H + h, b * nq + jnp.minimum(ki, qi), 0)

    def o_map(b, h, qi, ki):
        return (h, b * nq + qi, 0)

    return pl.pallas_call(
        _flash_attn_kernel,
        out_shape=jax.ShapeDtypeStruct((H, M, hd), out_dtype),
        grid_spec=pltpu.PrefetchScalarGridSpec(
            num_scalar_prefetch=0,
            grid=(batch, H, nq, nq),
            in_specs=[
                pl.BlockSpec((1, blk, hd), q_map),
                pl.BlockSpec((1, blk, hd), k_map),
                pl.BlockSpec((1, blk, hd), v_map),
            ],
            out_specs=pl.BlockSpec((1, blk, hd), o_map),
            scratch_shapes=[
                pltpu.VMEM((blk, 1), jnp.float32),    # running max
                pltpu.VMEM((blk, 1), jnp.float32),    # running sum
                pltpu.VMEM((blk, hd), jnp.float32),   # output accumulator
            ],
        ),
        compiler_params=pltpu.CompilerParams(
            dimension_semantics=("parallel", "parallel", "parallel",
                                 "arbitrary"),
            vmem_limit_bytes=_VMEM_LIMIT,
        ),
    )(qkv, qkv, qkv)


# --------------------------------------------------------------------------
# Output projection with the head-merge folded in as a reduction over H:
#   out = sum_h ctx[h] @ wo_heads[h] + bias
# --------------------------------------------------------------------------
def _out_proj_kernel(ctx_ref, w_ref, b_ref, o_ref, acc_ref):
    h = pl.program_id(1)

    @pl.when(h == 0)
    def _init():
        acc_ref[...] = jnp.zeros_like(acc_ref)

    acc_ref[...] += jnp.dot(ctx_ref[0], w_ref[0],
                            preferred_element_type=jnp.float32)

    @pl.when(h == pl.num_programs(1) - 1)
    def _finalize():
        o_ref[...] = (acc_ref[...] + b_ref[...]).astype(o_ref.dtype)


def _out_projection(ctx, wo_heads, bias, *, tm=512):
    H, M, hd = ctx.shape
    d_out = wo_heads.shape[2]
    tm = _pick_divisor(M, (tm, 256, 128, 64, 32, 16, 8))

    return pl.pallas_call(
        _out_proj_kernel,
        out_shape=jax.ShapeDtypeStruct((M, d_out), ctx.dtype),
        grid_spec=pltpu.PrefetchScalarGridSpec(
            num_scalar_prefetch=0,
            grid=(M // tm, H),
            in_specs=[
                pl.BlockSpec((1, tm, hd), lambda i, h: (h, i, 0)),
                pl.BlockSpec((1, hd, d_out), lambda i, h: (h, 0, 0)),
                pl.BlockSpec((1, d_out), lambda i, h: (0, 0)),
            ],
            out_specs=pl.BlockSpec((tm, d_out), lambda i, h: (i, 0)),
            scratch_shapes=[pltpu.VMEM((tm, d_out), jnp.float32)],
        ),
        compiler_params=pltpu.CompilerParams(
            dimension_semantics=("parallel", "arbitrary"),
            vmem_limit_bytes=_VMEM_LIMIT,
        ),
    )(ctx, wo_heads, bias)


# --------------------------------------------------------------------------
# Parameter prep (one-time, hoisted out of the per-call path) + forward pass
# --------------------------------------------------------------------------
def prepare_params(wq, wk, wv, wo, bo, num_heads):
    """Fuse Wq|Wk|Wv (with the softmax scale folded into Wq), reshape Wo per
    head, and reshape the bias — all once, at parameter-prep time."""
    d_in, d_out = wq.shape
    head_dim = d_out // num_heads
    scale = 1.0 / math.sqrt(head_dim)
    w_qkv = jnp.concatenate([wq * scale, wk, wv], axis=1)   # (d_in, 3*d_out)
    wo_heads = wo.reshape(num_heads, head_dim, d_out)        # (H, hd, d_out)
    return w_qkv, wo_heads, bo.reshape(1, d_out)


def multi_head_attention(x, w_qkv, wo_heads, bias, *, num_heads, blk_t=256):
    """x: (B, T, d_in) -> (B, T, d_out)."""
    B, T, d_in = x.shape
    head_dim = wo_heads.shape[1]
    d_out = wo_heads.shape[2]

    blk = min(blk_t, _round_up(T, 8))
    t_pad = _round_up(T, blk)
    m = B * t_pad

    if t_pad != T:
        # Zero padding: padded keys are hidden by the causal mask on the
        # diagonal tile; padded query rows are sliced off at the end.
        x = jnp.pad(x, ((0, 0), (0, t_pad - T), (0, 0)))
    x_flat = x.reshape(m, d_in)

    qkv = _qkv_projection(x_flat, w_qkv,
                          num_heads=num_heads, head_dim=head_dim)
    ctx = _flash_attention(qkv, batch=B, num_heads=num_heads,
                           t_pad=t_pad, blk=blk, out_dtype=x.dtype)
    out = _out_projection(ctx, wo_heads, bias)
    out = out.reshape(B, t_pad, d_out)
    return out[:, :T, :] if t_pad != T else out


# --------------------------------------------------------------------------
# Pure-JAX reference (mirrors the PyTorch module)
# --------------------------------------------------------------------------
def _reference(x, wq, wk, wv, wo, bo, *, num_heads):
    B, T, d_in = x.shape
    d_out = wq.shape[1]
    head_dim = d_out // num_heads
    q = (x @ wq).reshape(B, T, num_heads, head_dim).transpose(0, 2, 1, 3)
    k = (x @ wk).reshape(B, T, num_heads, head_dim).transpose(0, 2, 1, 3)
    v = (x @ wv).reshape(B, T, num_heads, head_dim).transpose(0, 2, 1, 3)
    scores = jnp.einsum("bhqd,bhkd->bhqk", q, k)
    mask = jnp.triu(jnp.ones((T, T), dtype=bool), k=1)
    scores = jnp.where(mask[None, None], -jnp.inf, scores)
    w = jax.nn.softmax(scores / math.sqrt(head_dim), axis=-1)
    ctx = jnp.einsum("bhqk,bhkd->bhqd", w, v)
    ctx = ctx.transpose(0, 2, 1, 3).reshape(B, T, d_out)
    return ctx @ wo + bo


if __name__ == "__main__":
    # Small shapes consistent with the module's forward.
    B, T, D_IN, D_OUT, NUM_HEADS = 2, 8, 32, 32, 4
    DROPOUT = 0.0  # identity (inference)

    key = jax.random.PRNGKey(0)
    kx, kq, kk, kv, ko, kb = jax.random.split(key, 6)

    x = jax.random.normal(kx, (B, T, D_IN), dtype=jnp.float32)
    # nn.Linear(d_in, d_out).weight is (d_out, d_in); we pass the transpose.
    wq = jax.random.normal(kq, (D_IN, D_OUT), dtype=jnp.float32) / math.sqrt(D_IN)
    wk = jax.random.normal(kk, (D_IN, D_OUT), dtype=jnp.float32) / math.sqrt(D_IN)
    wv = jax.random.normal(kv, (D_IN, D_OUT), dtype=jnp.float32) / math.sqrt(D_IN)
    wo = jax.random.normal(ko, (D_OUT, D_OUT), dtype=jnp.float32) / math.sqrt(D_OUT)
    bo = jax.random.normal(kb, (D_OUT,), dtype=jnp.float32) * 0.01

    # One-time parameter prep (hoisted weight fusion / scale folding).
    w_qkv, wo_heads, bias = prepare_params(wq, wk, wv, wo, bo, NUM_HEADS)

    out = multi_head_attention(x, w_qkv, wo_heads, bias, num_heads=NUM_HEADS)
    out = jax.block_until_ready(out)

    ref = _reference(x, wq, wk, wv, wo, bo, num_heads=NUM_HEADS)
    assert out.shape == (B, T, D_OUT)
    max_err = float(jnp.max(jnp.abs(out - ref)))
    assert jnp.allclose(out, ref, atol=1e-3, rtol=1e-3), (
        f"mismatch vs pure-JAX reference (max abs err = {max_err})")

    print("KERNEL_OK")
</pallas_src>

<mosaic_0001>
module attributes {stable_mosaic.version = 11 : i64} {
  func.func @_qkv_proj_kernel(%arg0: i32, %arg1: i32, %arg2: memref<16x32xf32, #tpu.memory_space<vmem>>, %arg3: memref<32x96xf32, #tpu.memory_space<vmem>>, %arg4: memref<12x16x8xf32, #tpu.memory_space<vmem>>, %arg5: memref<16x96xf32, #tpu.memory_space<vmem>>) attributes {dimension_semantics = [#tpu.dimension_semantics<parallel>, #tpu.dimension_semantics<arbitrary>], iteration_bounds = array<i64: 1, 1>, scalar_prefetch = 0 : i64, scratch_operands = 1 : i64, tpu.core_type = #tpu.core_type<tc>, window_params = [{transform_indices = @transform_0, window_bounds = array<i64: 16, 32>}, {transform_indices = @transform_1, window_bounds = array<i64: 32, 96>}, {transform_indices = @transform_2, window_bounds = array<i64: 12, 16, 8>}]} {
    %c0_i32 = arith.constant 0 : i32
    %0 = arith.cmpi eq, %arg1, %c0_i32 : i32
    %1 = arith.extui %0 : i1 to i32
    %c0_i32_0 = arith.constant 0 : i32
    %2 = arith.cmpi ne, %1, %c0_i32_0 : i32
    scf.if %2 {
      %cst_10 = arith.constant 0.000000e+00 : f32
      %12 = vector.broadcast %cst_10 : f32 to vector<16x96xf32>
      %c0_11 = arith.constant 0 : index
      %c0_12 = arith.constant 0 : index
      %13 = vector.load %arg5[%c0_11, %c0_12] : memref<16x96xf32, #tpu.memory_space<vmem>>, vector<16x96xf32>
      tpu.vector_store %arg5[%c0_11, %c0_12], %12 {strides = array<i32>} : memref<16x96xf32, #tpu.memory_space<vmem>>, vector<16x96xf32>,
    } else {
    }
    %c0 = arith.constant 0 : index
    %c0_1 = arith.constant 0 : index
    %3 = vector.load %arg5[%c0, %c0_1] : memref<16x96xf32, #tpu.memory_space<vmem>>, vector<16x96xf32>
    %c0_2 = arith.constant 0 : index
    %c0_3 = arith.constant 0 : index
    %4 = vector.load %arg2[%c0_2, %c0_3] : memref<16x32xf32, #tpu.memory_space<vmem>>, vector<16x32xf32>
    %c0_4 = arith.constant 0 : index
    %c0_5 = arith.constant 0 : index
    %5 = vector.load %arg3[%c0_4, %c0_5] : memref<32x96xf32, #tpu.memory_space<vmem>>, vector<32x96xf32>
    %cst = arith.constant dense<0.000000e+00> : vector<16x96xf32>
    %6 = tpu.matmul %4, %5, %cst {dimension_numbers = #tpu.dot_dimension_numbers<[1], [0], [0], [1], [0, 0, 1, 1], [], []>} : vector<16x32xf32>, vector<32x96xf32>, vector<16x96xf32> -> vector<16x96xf32>
    %7 = arith.addf %3, %6 : vector<16x96xf32>
    %c0_6 = arith.constant 0 : index
    %c0_7 = arith.constant 0 : index
    %8 = vector.load %arg5[%c0_6, %c0_7] : memref<16x96xf32, #tpu.memory_space<vmem>>, vector<16x96xf32>
    tpu.vector_store %arg5[%c0_6, %c0_7], %7 {strides = array<i32>} : memref<16x96xf32, #tpu.memory_space<vmem>>, vector<16x96xf32>,
    %c0_i32_8 = arith.constant 0 : i32
    %9 = arith.cmpi eq, %arg1, %c0_i32_8 : i32
    %10 = arith.extui %9 : i1 to i32
    %c0_i32_9 = arith.constant 0 : i32
    %11 = arith.cmpi ne, %10, %c0_i32_9 : i32
    scf.if %11 {
      %c0_10 = arith.constant 0 : index
      %c0_11 = arith.constant 0 : index
      %12 = vector.load %arg5[%c0_10, %c0_11] : memref<16x96xf32, #tpu.memory_space<vmem>>, vector<16x96xf32>
      %13 = vector.extract_strided_slice %12 {offsets = [0, 0], sizes = [16, 8], strides = [1, 1]} : vector<16x96xf32> to vector<16x8xf32>
      %c0_12 = arith.constant 0 : index
      %c0_13 = arith.constant 0 : index
      %c0_14 = arith.constant 0 : index
      %14 = vector.load %arg4[%c0_12, %c0_13, %c0_14] : memref<12x16x8xf32, #tpu.memory_space<vmem>>, vector<1x16x8xf32>
      %15 = vector.shape_cast %14 : vector<1x16x8xf32> to vector<16x8xf32>
      %16 = vector.shape_cast %13 : vector<16x8xf32> to vector<1x16x8xf32>
      tpu.vector_store %arg4[%c0_12, %c0_13, %c0_14], %16 {strides = array<i32>} : memref<12x16x8xf32, #tpu.memory_space<vmem>>, vector<1x16x8xf32>,
      %17 = vector.extract_strided_slice %12 {offsets = [0, 8], sizes = [16, 8], strides = [1, 1]} : vector<16x96xf32> to vector<16x8xf32>
      %c1 = arith.constant 1 : index
      %c0_15 = arith.constant 0 : index
      %c0_16 = arith.constant 0 : index
      %18 = vector.load %arg4[%c1, %c0_15, %c0_16] : memref<12x16x8xf32, #tpu.memory_space<vmem>>, vector<1x16x8xf32>
      %19 = vector.shape_cast %18 : vector<1x16x8xf32> to vector<16x8xf32>
      %20 = vector.shape_cast %17 : vector<16x8xf32> to vector<1x16x8xf32>
      tpu.vector_store %arg4[%c1, %c0_15, %c0_16], %20 {strides = array<i32>} : memref<12x16x8xf32, #tpu.memory_space<vmem>>, vector<1x16x8xf32>,
      %21 = vector.extract_strided_slice %12 {offsets = [0, 16], sizes = [16, 8], strides = [1, 1]} : vector<16x96xf32> to vector<16x8xf32>
      %c2 = arith.constant 2 : index
      %c0_17 = arith.constant 0 : index
      %c0_18 = arith.constant 0 : index
      %22 = vector.load %arg4[%c2, %c0_17, %c0_18] : memref<12x16x8xf32, #tpu.memory_space<vmem>>, vector<1x16x8xf32>
      %23 = vector.shape_cast %22 : vector<1x16x8xf32> to vector<16x8xf32>
      %24 = vector.shape_cast %21 : vector<16x8xf32> to vector<1x16x8xf32>
      tpu.vector_store %arg4[%c2, %c0_17, %c0_18], %24 {strides = array<i32>} : memref<12x16x8xf32, #tpu.memory_space<vmem>>, vector<1x16x8xf32>,
      %25 = vector.extract_strided_slice %12 {offsets = [0, 24], sizes = [16, 8], strides = [1, 1]} : vector<16x96xf32> to vector<16x8xf32>
      %c3 = arith.constant 3 : index
      %c0_19 = arith.constant 0 : index
      %c0_20 = arith.constant 0 : index
      %26 = vector.load %arg4[%c3, %c0_19, %c0_20] : memref<12x16x8xf32, #tpu.memory_space<vmem>>, vector<1x16x8xf32>
      %27 = vector.shape_cast %26 : vector<1x16x8xf32> to vector<16x8xf32>
      %28 = vector.shape_cast %25 : vector<16x8xf32> to vector<1x16x8xf32>
      tpu.vector_store %arg4[%c3, %c0_19, %c0_20], %28 {strides = array<i32>} : memref<12x16x8xf32, #tpu.memory_space<vmem>>, vector<1x16x8xf32>,
      %29 = vector.extract_strided_slice %12 {offsets = [0, 32], sizes = [16, 8], strides = [1, 1]} : vector<16x96xf32> to vector<16x8xf32>
      %c4 = arith.constant 4 : index
      %c0_21 = arith.constant 0 : index
      %c0_22 = arith.constant 0 : index
      %30 = vector.load %arg4[%c4, %c0_21, %c0_22] : memref<12x16x8xf32, #tpu.memory_space<vmem>>, vector<1x16x8xf32>
      %31 = vector.shape_cast %30 : vector<1x16x8xf32> to vector<16x8xf32>
      %32 = vector.shape_cast %29 : vector<16x8xf32> to vector<1x16x8xf32>
      tpu.vector_store %arg4[%c4, %c0_21, %c0_22], %32 {strides = array<i32>} : memref<12x16x8xf32, #tpu.memory_space<vmem>>, vector<1x16x8xf32>,
      %33 = vector.extract_strided_slice %12 {offsets = [0, 40], sizes = [16, 8], strides = [1, 1]} : vector<16x96xf32> to vector<16x8xf32>
      %c5 = arith.constant 5 : index
      %c0_23 = arith.constant 0 : index
      %c0_24 = arith.constant 0 : index
      %34 = vector.load %arg4[%c5, %c0_23, %c0_24] : memref<12x16x8xf32, #tpu.memory_space<vmem>>, vector<1x16x8xf32>
      %35 = vector.shape_cast %34 : vector<1x16x8xf32> to vector<16x8xf32>
      %36 = vector.shape_cast %33 : vector<16x8xf32> to vector<1x16x8xf32>
      tpu.vector_store %arg4[%c5, %c0_23, %c0_24], %36 {strides = array<i32>} : memref<12x16x8xf32, #tpu.memory_space<vmem>>, vector<1x16x8xf32>,
      %37 = vector.extract_strided_slice %12 {offsets = [0, 48], sizes = [16, 8], strides = [1, 1]} : vector<16x96xf32> to vector<16x8xf32>
      %c6 = arith.constant 6 : index
      %c0_25 = arith.constant 0 : index
      %c0_26 = arith.constant 0 : index
      %38 = vector.load %arg4[%c6, %c0_25, %c0_26] : memref<12x16x8xf32, #tpu.memory_space<vmem>>, vector<1x16x8xf32>
      %39 = vector.shape_cast %38 : vector<1x16x8xf32> to vector<16x8xf32>
      %40 = vector.shape_cast %37 : vector<16x8xf32> to vector<1x16x8xf32>
      tpu.vector_store %arg4[%c6, %c0_25, %c0_26], %40 {strides = array<i32>} : memref<12x16x8xf32, #tpu.memory_space<vmem>>, vector<1x16x8xf32>,
      %41 = vector.extract_strided_slice %12 {offsets = [0, 56], sizes = [16, 8], strides = [1, 1]} : vector<16x96xf32> to vector<16x8xf32>
      %c7 = arith.constant 7 : index
      %c0_27 = arith.constant 0 : index
      %c0_28 = arith.constant 0 : index
      %42 = vector.load %arg4[%c7, %c0_27, %c0_28] : memref<12x16x8xf32, #tpu.memory_space<vmem>>, vector<1x16x8xf32>
      %43 = vector.shape_cast %42 : vector<1x16x8xf32> to vector<16x8xf32>
      %44 = vector.shape_cast %41 : vector<16x8xf32> to vector<1x16x8xf32>
      tpu.vector_store %arg4[%c7, %c0_27, %c0_28], %44 {strides = array<i32>} : memref<12x16x8xf32, #tpu.memory_space<vmem>>, vector<1x16x8xf32>,
      %45 = vector.extract_strided_slice %12 {offsets = [0, 64], sizes = [16, 8], strides = [1, 1]} : vector<16x96xf32> to vector<16x8xf32>
      %c8 = arith.constant 8 : index
      %c0_29 = arith.constant 0 : index
      %c0_30 = arith.constant 0 : index
      %46 = vector.load %arg4[%c8, %c0_29, %c0_30] : memref<12x16x8xf32, #tpu.memory_space<vmem>>, vector<1x16x8xf32>
      %47 = vector.shape_cast %46 : vector<1x16x8xf32> to vector<16x8xf32>
      %48 = vector.shape_cast %45 : vector<16x8xf32> to vector<1x16x8xf32>
      tpu.vector_store %arg4[%c8, %c0_29, %c0_30], %48 {strides = array<i32>} : memref<12x16x8xf32, #tpu.memory_space<vmem>>, vector<1x16x8xf32>,
      %49 = vector.extract_strided_slice %12 {offsets = [0, 72], sizes = [16, 8], strides = [1, 1]} : vector<16x96xf32> to vector<16x8xf32>
      %c9 = arith.constant 9 : index
      %c0_31 = arith.constant 0 : index
      %c0_32 = arith.constant 0 : index
      %50 = vector.load %arg4[%c9, %c0_31, %c0_32] : memref<12x16x8xf32, #tpu.memory_space<vmem>>, vector<1x16x8xf32>
      %51 = vector.shape_cast %50 : vector<1x16x8xf32> to vector<16x8xf32>
      %52 = vector.shape_cast %49 : vector<16x8xf32> to vector<1x16x8xf32>
      tpu.vector_store %arg4[%c9, %c0_31, %c0_32], %52 {strides = array<i32>} : memref<12x16x8xf32, #tpu.memory_space<vmem>>, vector<1x16x8xf32>,
      %53 = vector.extract_strided_slice %12 {offsets = [0, 80], sizes = [16, 8], strides = [1, 1]} : vector<16x96xf32> to vector<16x8xf32>
      %c10 = arith.constant 10 : index
      %c0_33 = arith.constant 0 : index
      %c0_34 = arith.constant 0 : index
      %54 = vector.load %arg4[%c10, %c0_33, %c0_34] : memref<12x16x8xf32, #tpu.memory_space<vmem>>, vector<1x16x8xf32>
      %55 = vector.shape_cast %54 : vector<1x16x8xf32> to vector<16x8xf32>
      %56 = vector.shape_cast %53 : vector<16x8xf32> to vector<1x16x8xf32>
      tpu.vector_store %arg4[%c10, %c0_33, %c0_34], %56 {strides = array<i32>} : memref<12x16x8xf32, #tpu.memory_space<vmem>>, vector<1x16x8xf32>,
      %57 = vector.extract_strided_slice %12 {offsets = [0, 88], sizes = [16, 8], strides = [1, 1]} : vector<16x96xf32> to vector<16x8xf32>
      %c11 = arith.constant 11 : index
      %c0_35 = arith.constant 0 : index
      %c0_36 = arith.constant 0 : index
      %58 = vector.load %arg4[%c11, %c0_35, %c0_36] : memref<12x16x8xf32, #tpu.memory_space<vmem>>, vector<1x16x8xf32>
      %59 = vector.shape_cast %58 : vector<1x16x8xf32> to vector<16x8xf32>
      %60 = vector.shape_cast %57 : vector<16x8xf32> to vector<1x16x8xf32>
      tpu.vector_store %arg4[%c11, %c0_35, %c0_36], %60 {strides = array<i32>} : memref<12x16x8xf32, #tpu.memory_space<vmem>>, vector<1x16x8xf32>,
    } else {
    }
    return
  }
  func.func @transform_0(%arg0: i32, %arg1: i32) -> (i32, i32) {
    %c0_i32 = arith.constant 0 : i32
    return %arg0, %arg1 : i32, i32
  }
  func.func @transform_1(%arg0: i32, %arg1: i32) -> (i32, i32) {
    %c0_i32 = arith.constant 0 : i32
    %c0_i32_0 = arith.constant 0 : i32
    return %arg1, %c0_i32 : i32, i32
  }
  func.func @transform_2(%arg0: i32, %arg1: i32) -> (i32, i32, i32) {
    %c0_i32 = arith.constant 0 : i32
    %c0_i32_0 = arith.constant 0 : i32
    %c0_i32_1 = arith.constant 0 : i32
    return %c0_i32, %arg0, %c0_i32_0 : i32, i32, i32
  }
}

</mosaic_0001>

<llo_original>
// kernel: tpu_custom_call.1
$region0: #{tpu_custom_call.1}
  #allocation0 [shape = 'u32[]', space=smem, size = 0x4, offset = 0x4, fixed_abs, tag = 'smem constant byte address 0x4 - core index']
  #allocation1 [shape = 'u32[144,128]{1,0:T(1,128)}', space=vmem, size = 0x12000, scoped, tag = 'internal scratch']
  #allocation2 [shape = 'f32[16,96]{1,0:T(8,128)}', space=vmem, size = 0x2000, scoped, tag = 'scratch operand']
  %s0 = inlined_call_operand.hbm [shape: f32[16,32], index: 0, kind: input, shape index: {}]
  %s1 = inlined_call_operand.hbm [shape: f32[32,96], index: 1, kind: input, shape index: {}]
  %s2 = inlined_call_operand.vmem [shape: f32[12,16,8], index: 2, kind: output, shape index: {}]
  %s3 = sld [smem:[#allocation0]]
  $region34: #{tpu_custom_call.1} parent=0
    _
  %s5 = ssub.s32 1, %s3
  %s6 = scalar_select 0, %s5, %s3
  $region1: #{tpu_custom_call.1} parent=0
    #allocation3 [shape = 'u8[8192]{0}', space=vmem, size = 0x2000, scoped, tag = 'input window, operand 0, single buffered']
    #allocation4 [shape = 's32[1]{0}', space=sflag, size = 0x4, scoped, tag = 'scoped memory for tpu_custom_call.1']
    #allocation5 [shape = 'u8[16384]{0}', space=vmem, size = 0x4000, scoped, tag = 'input window, operand 1, single buffered']
    #allocation6 [shape = 's32[1]{0}', space=sflag, size = 0x4, scoped, tag = 'scoped memory for tpu_custom_call.1']
    %7 = vsyncpa [#allocation4], 0
    %8 = vsyncpa [#allocation6], 0
    // Predicated region
    $region2: #{tpu_custom_call.1} parent=1 // pred_check
      _
    $region3: #{tpu_custom_call.1} parent=1 // pred_check_branch
      %10 = sbr.rel (0) target = $region5
    $region4: #{tpu_custom_call.1} parent=1 // pred_region
      %s12 = ssub.s32 256, 256
      %13 = vsyncadd [#allocation4], %s12
      %s14 = sshll.u32 [#allocation3], 4
      %s15 = int_to_ptr.vmem [resolvable:$true] %s14
      %20 = dma.hbm_to_vmem [thread:$0]  %s0, 256, %s15, [#allocation4], 128, 128, 8
    $region5: #{tpu_custom_call.1} parent=1 // pred_fallthru
      _
    // Predicated region
    $region6: #{tpu_custom_call.1} parent=1 // pred_check
      _
    $region7: #{tpu_custom_call.1} parent=1 // pred_check_branch
      %22 = sbr.rel (0) target = $region9
    $region8: #{tpu_custom_call.1} parent=1 // pred_region
      %s24 = ssub.s32 512, 512
      %25 = vsyncadd [#allocation6], %s24
      %s26 = sshll.u32 [#allocation5], 4
      %s27 = int_to_ptr.vmem [resolvable:$true] %s26
      %32 = dma.hbm_to_vmem [thread:$0]  %s1, 512, %s27, [#allocation6], 128, 128, 8
    $region9: #{tpu_custom_call.1} parent=1 // pred_fallthru
      _
    // Predicated region
    $region10: #{tpu_custom_call.1} parent=1 // pred_check
      _
    $region11: #{tpu_custom_call.1} parent=1 // pred_check_branch
      %34 = sbr.rel (0) target = $region13
    $region12: #{tpu_custom_call.1} parent=1 // pred_region
      %35 = dma.done [#allocation4], 256
    $region13: #{tpu_custom_call.1} parent=1 // pred_fallthru
      _
    // Predicated region
    $region14: #{tpu_custom_call.1} parent=1 // pred_check
      _
    $region15: #{tpu_custom_call.1} parent=1 // pred_check_branch
      %37 = sbr.rel (0) target = $region17
    $region16: #{tpu_custom_call.1} parent=1 // pred_region
      %38 = dma.done [#allocation6], 512
    $region17: #{tpu_custom_call.1} parent=1 // pred_fallthru
      _
    %p39 = scmp.eq.s32.totalorder 0, 0
    // Predicated region
    $region18: #{tpu_custom_call.1} parent=1 // pred_check
      %p40 = pneg %p39
    $region19: #{tpu_custom_call.1} parent=1 // pred_check_branch
      %42 = sbr.rel (%p40) target = $region21
    $region20: #{tpu_custom_call.1} parent=1 // pred_region
      %vm43 = vcmask 785408
      %44 = vst.msk [vmem:[#allocation2] sm:$0xff] %vm43, 0.0
      %45 = vst.msk [vmem:[#allocation2 + $0x8] sm:$0xff] %vm43, 0.0
    $region21: #{tpu_custom_call.1} parent=1 // pred_fallthru
      _
    %v46 = vld [vmem:[#allocation2] sm:$0xff]
    %v47 = vld [vmem:[#allocation2 + $0x8] sm:$0xff]
    %v48 = vld [vmem:[#allocation3] sm:$0xff]
    %v49 = vld [vmem:[#allocation3 + $0x8] sm:$0xff]
    %v50 = vld [vmem:[#allocation5] sm:$0xff]
    %v51 = vld [vmem:[#allocation5 + $0x8] sm:$0xff]
    %v52 = vld [vmem:[#allocation5 + $0x10] sm:$0xff]
    %v53 = vld [vmem:[#allocation5 + $0x18] sm:$0xff]
    %vm54 = vcmask 261120
    %v56 = vsel %vm54, %v48, 0
    %v59 = vsel %vm54, %v49, 0
    %61 = vmatprep.subr.mxu0 0.0
    %62 = vmatpush1.msra.mxu0 %v50
    %63 = vmatprep.subr.mxu0 0.0
    %64 = vmatpush1.msra.mxu0 %v51
    %65 = vmatprep.subr.mxu0 0.0
    %66 = vmatpush1.msra.mxu0 %v52
    %67 = vmatprep.subr.mxu0 0.0
    %68 = vmatpush1.msra.mxu0 %v53
    %69 = vmatprep.subr.mxu0 0.0
    %70 = vmatpush1.msra.mxu0 0.0
    %71 = vmatprep.subr.mxu0 0.0
    %72 = vmatpush1.msra.mxu0 0.0
    %73 = vmatprep.subr.mxu0 0.0
    %74 = vmatpush1.msra.mxu0 0.0
    %75 = vmatprep.subr.mxu0 0.0
    %76 = vmatpush1.msra.mxu0 0.0
    %77 = vmatprep.subr.mxu0 0.0
    %78 = vmatpush1.msra.mxu0 0.0
    %79 = vmatprep.subr.mxu0 0.0
    %80 = vmatpush1.msra.mxu0 0.0
    %81 = vmatprep.subr.mxu0 0.0
    %82 = vmatpush1.msra.mxu0 0.0
    %83 = vmatprep.subr.mxu0 0.0
    %84 = vmatpush1.msra.mxu0 0.0
    %85 = vmatprep.subr.mxu0 0.0
    %86 = vmatpush1.msra.mxu0 0.0
    %87 = vmatprep.subr.mxu0 0.0
    %88 = vmatpush1.msra.mxu0 0.0
    %89 = vmatprep.subr.mxu0 0.0
    %90 = vmatpush1.msra.mxu0 0.0
    %91 = vmatprep.subr.mxu0 0.0
    %92 = vmatpush1.msra.mxu0 0.0
    %93 = vmatprep.subr.mxu0 0.0
    %94 = vmatpush1.msra.mxu0 0.0
    %95 = vmatprep.subr.mxu0 0.0
    %96 = vmatpush1.msra.mxu0 0.0
    %97 = vmatprep.subr.mxu0 0.0
    %98 = vmatpush1.msra.mxu0 0.0
    %99 = vmatprep.subr.mxu0 0.0
    %100 = vmatpush1.msra.mxu0 0.0
    %101 = vmatprep.subr.mxu0 0.0
    %102 = vmatpush1.msra.mxu0 0.0
    %103 = vmatprep.subr.mxu0 0.0
    %104 = vmatpush1.msra.mxu0 0.0
    %105 = vmatprep.subr.mxu0 0.0
    %106 = vmatpush1.msra.mxu0 0.0
    %107 = vmatprep.subr.mxu0 0.0
    %108 = vmatpush1.msra.mxu0 0.0
    %109 = vmatprep.subr.mxu0 0.0
    %110 = vmatpush1.msra.mxu0 0.0
    %111 = vmatprep.subr.mxu0 0.0
    %112 = vmatpush1.msra.mxu0 0.0
    %113 = vmatprep.subr.mxu0 0.0
    %114 = vmatpush1.msra.mxu0 0.0
    %115 = vmatprep.subr.mxu0 0.0
    %116 = vmatpush1.msra.mxu0 0.0
    %117 = vmatprep.subr.mxu0 0.0
    %118 = vmatpush1.msra.mxu0 0.0
    %119 = vmatprep.subr.mxu0 0.0
    %120 = vmatpush1.msra.mxu0 0.0
    %121 = vmatprep.subr.mxu0 0.0
    %122 = vmatpush1.msra.mxu0 0.0
    %123 = vmatprep.subr.mxu0 0.0
    %124 = vmatpush1.msra.mxu0 0.0
    %125 = vmatprep.mubr.f32.mxu0 0.0
    %126 = vmatmul.mubr.f32.gmra.mrb[0].mxu0 %v56
    %v127 = vpop.f32.mrb[0].mxu0
    %v128 = vadd.f32 0.0, %v127
    %v129 = vpop.f32.mrb[0].mxu0
    %130 = vmatprep.mubr.f32.mxu0 0.0
    %131 = vmatmul.mubr.f32.gmra.mrb[0].mxu0 %v59
    %v132 = vpop.f32.mrb[0].mxu0
    %v133 = vadd.f32 0.0, %v132
    %v134 = vpop.f32.mrb[0].mxu0
    %135 = vdwg.mxu0
    %v136 = vadd.f32 %v46, %v128
    %v137 = vadd.f32 %v47, %v133
    %vm138 = vcmask 785408
    %139 = vst.msk [vmem:[#allocation2] sm:$0xff] %vm138, %v136
    %140 = vst.msk [vmem:[#allocation2 + $0x8] sm:$0xff] %vm138, %v137
    // Predicated region
    $region22: #{tpu_custom_call.1} parent=1 // pred_check
      %p141 = pneg %p39
    $region23: #{tpu_custom_call.1} parent=1 // pred_check_branch
      %143 = sbr.rel (%p141) target = $region25
    $region24: #{tpu_custom_call.1} parent=1 // pred_region
      %v144 = vld [vmem:[#allocation2] sm:$0xff]
      %v145 = vld [vmem:[#allocation2 + $0x8] sm:$0xff]
      %vm146 = vcmask 64512
      %147 = vst.msk [vmem:[%s2] sm:$0xff] %vm146, %v144
      %148 = vst.msk [vmem:[%s2 + $0x8] sm:$0xff] %vm146, %v145
      %151 = vrot.lane.b32.xlu0 %v144, 120
      %v152 = vpop.permute.xlu0 %151
      %153 = vrot.lane.b32.xlu0 %v145, 120
      %v154 = vpop.permute.xlu0 %153
      %s157 = scalar_lea.vmem %s2, 16
      %158 = vst.msk [vmem:[%s157] sm:$0xff] %vm146, %v152
      %159 = vst.msk [vmem:[%s157 + $0x8] sm:$0xff] %vm146, %v154
      %160 = vrot.lane.b32.xlu0 %v144, 112
      %v161 = vpop.permute.xlu0 %160
      %162 = vrot.lane.b32.xlu0 %v145, 112
      %v163 = vpop.permute.xlu0 %162
      %s166 = scalar_lea.vmem %s2, 32
      %167 = vst.msk [vmem:[%s166] sm:$0xff] %vm146, %v161
      %168 = vst.msk [vmem:[%s166 + $0x8] sm:$0xff] %vm146, %v163
      %169 = vrot.lane.b32.xlu0 %v144, 104
      %v170 = vpop.permute.xlu0 %169
      %171 = vrot.lane.b32.xlu0 %v145, 104
      %v172 = vpop.permute.xlu0 %171
      %s175 = scalar_lea.vmem %s2, 48
      %176 = vst.msk [vmem:[%s175] sm:$0xff] %vm146, %v170
      %177 = vst.msk [vmem:[%s175 + $0x8] sm:$0xff] %vm146, %v172
      %178 = vrot.lane.b32.xlu0 %v144, 96
      %v179 = vpop.permute.xlu0 %178
      %180 = vrot.lane.b32.xlu0 %v145, 96
      %v181 = vpop.permute.xlu0 %180
      %s184 = scalar_lea.vmem %s2, 64
      %185 = vst.msk [vmem:[%s184] sm:$0xff] %vm146, %v179
      %186 = vst.msk [vmem:[%s184 + $0x8] sm:$0xff] %vm146, %v181
      %187 = vrot.lane.b32.xlu0 %v144, 88
      %v188 = vpop.permute.xlu0 %187
      %189 = vrot.lane.b32.xlu0 %v145, 88
      %v190 = vpop.permute.xlu0 %189
      %s193 = scalar_lea.vmem %s2, 80
      %194 = vst.msk [vmem:[%s193] sm:$0xff] %vm146, %v188
      %195 = vst.msk [vmem:[%s193 + $0x8] sm:$0xff] %vm146, %v190
      %196 = vrot.lane.b32.xlu0 %v144, 80
      %v197 = vpop.permute.xlu0 %196
      %198 = vrot.lane.b32.xlu0 %v145, 80
      %v199 = vpop.permute.xlu0 %198
      %s202 = scalar_lea.vmem %s2, 96
      %203 = vst.msk [vmem:[%s202] sm:$0xff] %vm146, %v197
      %204 = vst.msk [vmem:[%s202 + $0x8] sm:$0xff] %vm146, %v199
      %205 = vrot.lane.b32.xlu0 %v144, 72
      %v206 = vpop.permute.xlu0 %205
      %207 = vrot.lane.b32.xlu0 %v145, 72
      %v208 = vpop.permute.xlu0 %207
      %s211 = scalar_lea.vmem %s2, 112
      %212 = vst.msk [vmem:[%s211] sm:$0xff] %vm146, %v206
      %213 = vst.msk [vmem:[%s211 + $0x8] sm:$0xff] %vm146, %v208
      %214 = vrot.lane.b32.xlu0 %v144, 64
      %v215 = vpop.permute.xlu0 %214
      %216 = vrot.lane.b32.xlu0 %v145, 64
      %v217 = vpop.permute.xlu0 %216
      %s220 = scalar_lea.vmem %s2, 128
      %221 = vst.msk [vmem:[%s220] sm:$0xff] %vm146, %v215
      %222 = vst.msk [vmem:[%s220 + $0x8] sm:$0xff] %vm146, %v217
      %223 = vrot.lane.b32.xlu0 %v144, 56
      %v224 = vpop.permute.xlu0 %223
      %225 = vrot.lane.b32.xlu0 %v145, 56
      %v226 = vpop.permute.xlu0 %225
      %s229 = scalar_lea.vmem %s2, 144
      %230 = vst.msk [vmem:[%s229] sm:$0xff] %vm146, %v224
      %231 = vst.msk [vmem:[%s229 + $0x8] sm:$0xff] %vm146, %v226
      %232 = vrot.lane.b32.xlu0 %v144, 48
      %v233 = vpop.permute.xlu0 %232
      %234 = vrot.lane.b32.xlu0 %v145, 48
      %v235 = vpop.permute.xlu0 %234
      %s238 = scalar_lea.vmem %s2, 160
      %239 = vst.msk [vmem:[%s238] sm:$0xff] %vm146, %v233
      %240 = vst.msk [vmem:[%s238 + $0x8] sm:$0xff] %vm146, %v235
      %241 = vrot.lane.b32.xlu0 %v144, 40
      %v242 = vpop.permute.xlu0 %241
      %243 = vrot.lane.b32.xlu0 %v145, 40
      %v244 = vpop.permute.xlu0 %243
      %s247 = scalar_lea.vmem %s2, 176
      %248 = vst.msk [vmem:[%s247] sm:$0xff] %vm146, %v242
      %249 = vst.msk [vmem:[%s247 + $0x8] sm:$0xff] %vm146, %v244
    $region25: #{tpu_custom_call.1} parent=1 // pred_fallthru
      _
    // Predicated region
    $region26: #{tpu_custom_call.1} parent=1 // pred_check
      _
    $region27: #{tpu_custom_call.1} parent=1 // pred_check_branch
      %251 = sbr.rel (0) target = $region29
    $region28: #{tpu_custom_call.1} parent=1 // pred_region
      _
    $region29: #{tpu_custom_call.1} parent=1 // pred_fallthru
      _
    // Predicated region
    $region30: #{tpu_custom_call.1} parent=1 // pred_check
      _
    $region31: #{tpu_custom_call.1} parent=1 // pred_check_branch
      %253 = sbr.rel (0) target = $region33
    $region32: #{tpu_custom_call.1} parent=1 // pred_region
      _
    $region33: #{tpu_custom_call.1} parent=1 // pred_fallthru
      _
    %254 = vsyncpa [#allocation4], 1
    %255 = vsyncpa [#allocation6], 1

</llo_original>
